<compile_context>
chip_gen: v6e
topology: v6e:2x2x1
jax: 0.10.0
libtpu: 0.0.40
codegen_flags: <defaults>
</compile_context>

<pallas_src>
import math

import jax
import jax.numpy as jnp
from jax.experimental import pallas as pl
from jax.experimental.pallas import tpu as pltpu


def _round_up(x, m):
    return ((x + m - 1) // m) * m


def _cdiv(a, b):
    return -(-a // b)


# ---------------------------------------------------------------------------
# Kernel: one fused (Lt, 3C) x (3C, Dt) MXU matmul + positional-emb add.
# ---------------------------------------------------------------------------
def data_embedding_kernel(x3_ref, w_ref, pe_ref, o_ref):
    # x3_ref : (Lt, 3C)   shifted-concat input rows (batch dim squeezed)
    # w_ref  : (3C, Dt)   flattened conv taps (tap-major), one D-tile
    # pe_ref : (Lt, Dt)   positional embedding + conv bias (pre-folded)
    # o_ref  : (Lt, Dt)
    acc = jnp.dot(x3_ref[...], w_ref[...], preferred_element_type=jnp.float32)
    # Dropout(p=0.1): identity in inference mode.
    # TODO(synk): train-mode dropout mask (torch RNG semantics differ anyway).
    o_ref[...] = (acc + pe_ref[...]).astype(o_ref.dtype)


# ---------------------------------------------------------------------------
# One-time parameter prep (hoisted out of the per-call path).
# ---------------------------------------------------------------------------
def prepare_data_embedding_params(w, b, pe):
    """w: [3, C, D] (torch Conv1d weight [D, C, 3] transposed);
    b: [1, D] conv bias; pe: [L, D] sinusoidal positional embedding.
    Returns (w3, pe_b) with D padded to a multiple of 128 lanes."""
    _, C, D = w.shape
    Dp = _round_up(D, 128)
    w3 = w.reshape(3 * C, D)          # tap-major rows match the x3 concat order
    pe_b = pe + b                     # fold conv bias into the positional emb
    if Dp != D:
        w3 = jnp.pad(w3, ((0, 0), (0, Dp - D)))
        pe_b = jnp.pad(pe_b, ((0, 0), (0, Dp - D)))
    return w3, pe_b


_VMEM_BUDGET = 24 << 20  # target double-buffered per-step working set (bytes)


def data_embedding(x, w3, pe_b, *, d_model, row_tile=2048):
    """x: [B, L, C] f32; w3: [3C, Dp]; pe_b: [L, Dp]  ->  [B, L, d_model]."""
    B, L, C = x.shape
    Dp = w3.shape[1]
    D = d_model
    itemsize = jnp.dtype(x.dtype).itemsize

    # Circular conv taps as one shifted-concat: row l holds
    # [x[(l-1)%L], x[l], x[(l+1)%L]] along channels.  Fine while 3C << D
    # (Informer: c_in ~ 7); for large C build the window in-kernel instead.
    x3 = jnp.concatenate(
        [jnp.roll(x, 1, axis=1), x, jnp.roll(x, -1, axis=1)], axis=-1
    )  # [B, L, 3C]

    # --- L tiling: largest tile <= row_tile AND the VMEM budget, chosen so it
    # (nearly) divides L — avoids padded-row writes and a post-kernel slice.
    denom = (3 * C + 2 * Dp) * itemsize * 2           # bytes/row, dbl-buffered
    avail = _VMEM_BUDGET - 2 * (3 * C) * Dp * itemsize  # minus w3's buffers
    lt_cap = max(8, (avail // denom) // 8 * 8)
    row_tile_eff = max(8, min(_round_up(row_tile, 8), lt_cap))
    n_lt = max(1, _cdiv(L, row_tile_eff))
    Lt = _round_up(_cdiv(L, n_lt), 8)
    Lp = n_lt * Lt

    pe_bp = pe_b
    if Lp != L:
        x3 = jnp.pad(x3, ((0, 0), (0, Lp - L), (0, 0)))
        pe_bp = jnp.pad(pe_b, ((0, Lp - L), (0, 0)))

    # --- D tiling: only split D when the grid would otherwise be too small to
    # feed both v7x TensorCores; otherwise keep full-width lane-dense stores.
    m = Dp // 128
    n_dt = 1
    if n_lt * B < 4 and m > 1:
        need = _cdiv(4, n_lt * B)
        n_dt = m
        for d in range(2, m + 1):
            if m % d == 0 and d >= need:
                n_dt = d
                break
    Dt = Dp // n_dt

    out = pl.pallas_call(
        data_embedding_kernel,
        out_shape=jax.ShapeDtypeStruct((B, Lp, Dp), x.dtype),
        # B innermost: pe/w3 block indices are constant across the inner axis,
        # so those tiles are fetched once per (L-tile, D-tile), not per batch.
        grid=(n_lt, n_dt, B),
        in_specs=[
            pl.BlockSpec((None, Lt, 3 * C), lambda li, di, bi: (bi, li, 0)),
            pl.BlockSpec((3 * C, Dt), lambda li, di, bi: (0, di)),
            pl.BlockSpec((Lt, Dt), lambda li, di, bi: (li, di)),
        ],
        out_specs=pl.BlockSpec((None, Lt, Dt), lambda li, di, bi: (bi, li, di)),
        compiler_params=pltpu.CompilerParams(
            dimension_semantics=("parallel", "parallel", "parallel"),
            # >= the ~16.5 MiB worst-case working set; safe on v5e/v6e/v7x.
            vmem_limit_bytes=32 << 20,
        ),
    )(x3, w3, pe_bp)

    if Lp != L or Dp != D:
        out = out[:, :L, :D]
    return out


def make_positional_embedding(L, d_model, dtype=jnp.float32):
    """pe[l, 2i] = sin(l * div_term[i]); pe[l, 2i+1] = cos(l * div_term[i])."""
    pos = jnp.arange(L, dtype=jnp.float32)[:, None]
    div = jnp.exp(
        -(math.log(10000.0) / d_model)
        * jnp.arange(0, d_model, 2, dtype=jnp.float32)
    )
    pe = jnp.zeros((L, d_model), dtype=jnp.float32)
    pe = pe.at[:, 0::2].set(jnp.sin(pos * div))
    pe = pe.at[:, 1::2].set(jnp.cos(pos * div))
    return pe.astype(dtype)


if __name__ == "__main__":
    B, L, C, D = 2, 16, 8, 32  # batch, seq-len, c_in, d_model

    key = jax.random.PRNGKey(0)
    kx, kw, kb = jax.random.split(key, 3)

    x = jax.random.normal(kx, (B, L, C), dtype=jnp.float32)

    # Conv1d params (deterministic synthetic init).
    # torch weight is [D, C, 3], kaiming_normal fan_in = C*3; stored as [3, C, D].
    fan_in = C * 3
    w = math.sqrt(2.0 / fan_in) * jax.random.normal(kw, (3, C, D), dtype=jnp.float32)
    bound = 1.0 / math.sqrt(fan_in)
    b = jax.random.uniform(kb, (1, D), minval=-bound, maxval=bound, dtype=jnp.float32)

    pe = make_positional_embedding(L, D)

    # Hoisted, once-per-model parameter prep.
    w3, pe_b = prepare_data_embedding_params(w, b, pe)

    fwd = jax.jit(data_embedding, static_argnames=("d_model", "row_tile"))
    out = jax.block_until_ready(fwd(x, w3, pe_b, d_model=D))

    # Pure-JAX reference (circular-padded conv + bias + positional embedding).
    x_m1 = jnp.roll(x, 1, axis=1)
    x_p1 = jnp.roll(x, -1, axis=1)
    ref = (
        jnp.einsum("blc,cd->bld", x_m1, w[0])
        + jnp.einsum("blc,cd->bld", x, w[1])
        + jnp.einsum("blc,cd->bld", x_p1, w[2])
        + b[None]
        + pe[None]
    )

    assert out.shape == (B, L, D), out.shape
    assert jnp.allclose(out, ref, atol=1e-4, rtol=1e-4), float(
        jnp.max(jnp.abs(out - ref))
    )
    print("KERNEL_OK")
</pallas_src>

<mosaic_0001>
module attributes {stable_mosaic.version = 11 : i64} {
  func.func @data_embedding_kernel(%arg0: i32, %arg1: i32, %arg2: i32, %arg3: memref<1x16x24xf32, #tpu.memory_space<vmem>>, %arg4: memref<24x128xf32, #tpu.memory_space<vmem>>, %arg5: memref<16x128xf32, #tpu.memory_space<vmem>>, %arg6: memref<1x16x128xf32, #tpu.memory_space<vmem>>) attributes {dimension_semantics = [#tpu.dimension_semantics<parallel>, #tpu.dimension_semantics<parallel>, #tpu.dimension_semantics<parallel>], iteration_bounds = array<i64: 1, 1, 2>, scalar_prefetch = 0 : i64, scratch_operands = 0 : i64, tpu.core_type = #tpu.core_type<tc>, window_params = [{transform_indices = @transform_0, window_bounds = array<i64: 1, 16, 24>}, {transform_indices = @transform_1, window_bounds = array<i64: 24, 128>}, {transform_indices = @transform_2, window_bounds = array<i64: 16, 128>}, {transform_indices = @transform_3, window_bounds = array<i64: 1, 16, 128>}]} {
    %c0 = arith.constant 0 : index
    %c0_0 = arith.constant 0 : index
    %c0_1 = arith.constant 0 : index
    %0 = vector.load %arg3[%c0, %c0_0, %c0_1] : memref<1x16x24xf32, #tpu.memory_space<vmem>>, vector<1x16x24xf32>
    %1 = vector.shape_cast %0 : vector<1x16x24xf32> to vector<16x24xf32>
    %c0_2 = arith.constant 0 : index
    %c0_3 = arith.constant 0 : index
    %2 = vector.load %arg4[%c0_2, %c0_3] : memref<24x128xf32, #tpu.memory_space<vmem>>, vector<24x128xf32>
    %cst = arith.constant dense<0.000000e+00> : vector<16x128xf32>
    %3 = tpu.matmul %1, %2, %cst {dimension_numbers = #tpu.dot_dimension_numbers<[1], [0], [0], [1], [0, 0, 1, 1], [], []>} : vector<16x24xf32>, vector<24x128xf32>, vector<16x128xf32> -> vector<16x128xf32>
    %c0_4 = arith.constant 0 : index
    %c0_5 = arith.constant 0 : index
    %4 = vector.load %arg5[%c0_4, %c0_5] : memref<16x128xf32, #tpu.memory_space<vmem>>, vector<16x128xf32>
    %5 = arith.addf %3, %4 : vector<16x128xf32>
    %c0_6 = arith.constant 0 : index
    %c0_7 = arith.constant 0 : index
    %c0_8 = arith.constant 0 : index
    %6 = vector.load %arg6[%c0_6, %c0_7, %c0_8] : memref<1x16x128xf32, #tpu.memory_space<vmem>>, vector<1x16x128xf32>
    %7 = vector.shape_cast %6 : vector<1x16x128xf32> to vector<16x128xf32>
    %8 = vector.shape_cast %5 : vector<16x128xf32> to vector<1x16x128xf32>
    tpu.vector_store %arg6[%c0_6, %c0_7, %c0_8], %8 {strides = array<i32>} : memref<1x16x128xf32, #tpu.memory_space<vmem>>, vector<1x16x128xf32>,
    return
  }
  func.func @transform_0(%arg0: i32, %arg1: i32, %arg2: i32) -> (i32, i32, i32) {
    %c0_i32 = arith.constant 0 : i32
    %c0_i32_0 = arith.constant 0 : i32
    return %arg2, %arg0, %c0_i32 : i32, i32, i32
  }
  func.func @transform_1(%arg0: i32, %arg1: i32, %arg2: i32) -> (i32, i32) {
    %c0_i32 = arith.constant 0 : i32
    %c0_i32_0 = arith.constant 0 : i32
    return %c0_i32, %arg1 : i32, i32
  }
  func.func @transform_2(%arg0: i32, %arg1: i32, %arg2: i32) -> (i32, i32) {
    %c0_i32 = arith.constant 0 : i32
    return %arg0, %arg1 : i32, i32
  }
  func.func @transform_3(%arg0: i32, %arg1: i32, %arg2: i32) -> (i32, i32, i32) {
    %c0_i32 = arith.constant 0 : i32
    return %arg2, %arg0, %arg1 : i32, i32, i32
  }
}

</mosaic_0001>

<llo_original>
// kernel: data_embedding.1
$region0: #{data_embedding.1}
  #allocation0 [shape = 'u32[]', space=smem, size = 0x4, offset = 0x4, fixed_abs, tag = 'smem constant byte address 0x4 - core index']
  #allocation1 [shape = 'u32[144,128]{1,0:T(1,128)}', space=vmem, size = 0x12000, scoped, tag = 'internal scratch']
  %s0 = inlined_call_operand.vmem [shape: f32[2,16,24], index: 0, kind: input, shape index: {}]
  %s1 = inlined_call_operand.vmem [shape: f32[24,128], index: 1, kind: input, shape index: {}]
  %s2 = inlined_call_operand.vmem [shape: f32[16,128], index: 2, kind: input, shape index: {}]
  %s3 = inlined_call_operand.hbm [shape: f32[2,16,128], index: 3, kind: output, shape index: {}]
  %s4 = sld [smem:[#allocation0]]
  $region45: #{data_embedding.1} parent=0
    _
  %s6 = ssub.s32 1, %s4
  %s7 = scalar_select 0, %s6, %s4
  $region1: #{data_embedding.1} parent=0
    #allocation2 [shape = 'u8[16384]{0}', space=vmem, size = 0x4000, scoped, tag = 'output window, operand 0']
    #allocation3 [shape = 's32[2]{0}', space=sflag, size = 0x8, scoped, tag = 'scoped memory for data_embedding.1']
    %8 = vsyncpa [#allocation3], 0
    %s9 = scalar_lea.sflag [#allocation3], 1
    %10 = vsyncpa %s9, 0
    loop: start=0, step=1, limit=4
    $region2: #{data_embedding.1} parent=1 // loop_pre_header
      _
    $region3: #{data_embedding.1} parent=1 // loop_header
      %s12 = sphi 0, %s16
      %p13 = scmp.ge.s32.totalorder %s12, 4
      %s19 = sphi 0, %s38
      %s20 = sphi 0, %s34
      %s21 = sphi 0, %s30
      %s22 = sphi 0, %s19
      %s23 = sphi 0, %s20
      %s24 = sphi 0, %s21
      %s25 = sphi 0, %s22
      %s26 = sphi 0, %s23
      %s27 = sphi 0, %s24
      %s43 = sphi 0, %s45
      %s46 = sphi 0, %s43
      %s47 = sphi 0, %s46
      %s63 = sphi 0, %s47
      %s69 = sphi 0, %s71
      %s72 = sphi 0, %s69
      %s73 = sphi 0, %s72
      %s89 = sphi 0, %s73
      %s97 = sphi 0, %s99
      %s100 = sphi 0, %s97
      %s101 = sphi 0, %s100
      %s117 = sphi 0, %s101
      %s127 = sphi 0, %s129
      %s130 = sphi 0, %s127
      %s131 = sphi 0, %s130
      %s147 = sphi 0, %s131
    $region4: #{data_embedding.1} parent=1 // loop_header_branch
      %15 = sbr.rel (%p13) target = $region8
    $region5: #{data_embedding.1} parent=1 // loop_body
      %s17 = ssub.s32 %s12, 1
      %s18 = ssub.s32 %s12, 2
      %s28 = sadd.s32 1, %s21
      %p29 = scmp.ge.s32.totalorder %s28, 2
      %s30 = scalar_select %p29, 0, %s28
      %s31 = sadd.s32 1, %s20
      %s32 = scalar_select %p29, %s31, %s20
      %p33 = scmp.ge.s32.totalorder %s32, 1
      %s34 = scalar_select %p33, 0, %s32
      %s35 = sadd.s32 1, %s19
      %s36 = scalar_select %p33, %s35, %s19
      %p37 = scmp.ge.s32.totalorder %s36, 1
      %s38 = scalar_select %p37, 0, %s36
      %s39 = ssub.s32 %s21, %s30
      %s40 = ssub.s32 %s19, %s38
      %s41 = sor.u32 %s39, %s40
      %p42 = scmp.eq.s32.totalorder %s41, 0
      %s44 = sadd.s32 %s43, 1
      %s45 = scalar_select %p42, %s43, %s44
      %p48 = pneg %p42
      %p49 = scmp.eq.s32.totalorder %s12, 1
      %p50 = por %p48, %p49
      %p51 = scmp.ne.s32.totalorder %s43, %s46
      %p52 = scmp.eq.s32.totalorder %s12, 0
      %p53 = por %p51, %p52
      %p54 = scmp.ne.s32.totalorder %s43, %s46
      %p55 = scmp.eq.s32.totalorder %s17, 1
      %p56 = por %p54, %p55
      %p57 = scmp.ne.s32.totalorder %s46, %s47
      %p58 = scmp.eq.s32.totalorder %s17, 0
      %p59 = por %p57, %p58
      %p60 = scmp.ne.s32.totalorder %s46, %s47
      %p61 = scmp.eq.s32.totalorder %s18, 1
      %p62 = por %p60, %p61
      %p64 = scmp.ne.s32.totalorder %s47, %s63
      %p65 = scmp.eq.s32.totalorder %s18, 0
      %p66 = por %p64, %p65
      %s67 = ssub.s32 %s20, %s34
      %p68 = scmp.eq.s32.totalorder %s67, 0
      %s70 = sadd.s32 %s69, 1
      %s71 = scalar_select %p68, %s69, %s70
      %p74 = pneg %p68
      %p75 = scmp.eq.s32.totalorder %s12, 1
      %p76 = por %p74, %p75
      %p77 = scmp.ne.s32.totalorder %s69, %s72
      %p78 = scmp.eq.s32.totalorder %s12, 0
      %p79 = por %p77, %p78
      %p80 = scmp.ne.s32.totalorder %s69, %s72
      %p81 = scmp.eq.s32.totalorder %s17, 1
      %p82 = por %p80, %p81
      %p83 = scmp.ne.s32.totalorder %s72, %s73
      %p84 = scmp.eq.s32.totalorder %s17, 0
      %p85 = por %p83, %p84
      %p86 = scmp.ne.s32.totalorder %s72, %s73
      %p87 = scmp.eq.s32.totalorder %s18, 1
      %p88 = por %p86, %p87
      %p90 = scmp.ne.s32.totalorder %s73, %s89
      %p91 = scmp.eq.s32.totalorder %s18, 0
      %p92 = por %p90, %p91
      %s93 = ssub.s32 %s19, %s38
      %s94 = ssub.s32 %s20, %s34
      %s95 = sor.u32 %s93, %s94
      %p96 = scmp.eq.s32.totalorder %s95, 0
      %s98 = sadd.s32 %s97, 1
      %s99 = scalar_select %p96, %s97, %s98
      %p102 = pneg %p96
      %p103 = scmp.eq.s32.totalorder %s12, 1
      %p104 = por %p102, %p103
      %p105 = scmp.ne.s32.totalorder %s97, %s100
      %p106 = scmp.eq.s32.totalorder %s12, 0
      %p107 = por %p105, %p106
      %p108 = scmp.ne.s32.totalorder %s97, %s100
      %p109 = scmp.eq.s32.totalorder %s17, 1
      %p110 = por %p108, %p109
      %p111 = scmp.ne.s32.totalorder %s100, %s101
      %p112 = scmp.eq.s32.totalorder %s17, 0
      %p113 = por %p111, %p112
      %p114 = scmp.ne.s32.totalorder %s100, %s101
      %p115 = scmp.eq.s32.totalorder %s18, 1
      %p116 = por %p114, %p115
      %p118 = scmp.ne.s32.totalorder %s101, %s117
      %p119 = scmp.eq.s32.totalorder %s18, 0
      %p120 = por %p118, %p119
      %s121 = ssub.s32 %s21, %s30
      %s122 = ssub.s32 %s19, %s38
      %s123 = sor.u32 %s121, %s122
      %s124 = ssub.s32 %s20, %s34
      %s125 = sor.u32 %s123, %s124
      %p126 = scmp.eq.s32.totalorder %s125, 0
      %s128 = sadd.s32 %s127, 1
      %s129 = scalar_select %p126, %s127, %s128
      %p132 = pneg %p126
      %p133 = scmp.eq.s32.totalorder %s12, 1
      %p134 = por %p132, %p133
      %p135 = scmp.ne.s32.totalorder %s127, %s130
      %p136 = scmp.eq.s32.totalorder %s12, 0
      %p137 = por %p135, %p136
      %p138 = scmp.ne.s32.totalorder %s127, %s130
      %p139 = scmp.eq.s32.totalorder %s17, 1
      %p140 = por %p138, %p139
      %p141 = scmp.ne.s32.totalorder %s130, %s131
      %p142 = scmp.eq.s32.totalorder %s17, 0
      %p143 = por %p141, %p142
      %p144 = scmp.ne.s32.totalorder %s130, %s131
      %p145 = scmp.eq.s32.totalorder %s18, 1
      %p146 = por %p144, %p145
      %p148 = scmp.ne.s32.totalorder %s131, %s147
      %p149 = scmp.eq.s32.totalorder %s18, 0
      %p150 = por %p148, %p149
      %p151 = scmp.le.s32.totalorder 1, %s12
      %p152 = scmp.lt.s32.totalorder %s12, 3
      %p153 = pnand %p151, %p152
      %p154 = pneg %p153
      // Predicated region
      $region9: #{data_embedding.1} parent=5 // pred_check
        _
      $region10: #{data_embedding.1} parent=5 // pred_check_branch
        %156 = sbr.rel (%p153) target = $region12
      $region11: #{data_embedding.1} parent=5 // pred_region
        %s157 = ssub.s32 %s12, 1
        // Predicated region
        $region13: #{data_embedding.1} parent=11 // pred_check
          %p158 = pneg %p85
        $region14: #{data_embedding.1} parent=11 // pred_check_branch
          %160 = sbr.rel (%p158) target = $region16
        $region15: #{data_embedding.1} parent=11 // pred_region
          %p161 = scmp.lt.s32.totalorder %s23, 0
          %s162 = scalar_select %p161, %s23, 0
          %s163 = smul.addr %s162, 8
          %s164 = scalar_lea.vmem %s1, %s163
        $region16: #{data_embedding.1} parent=11 // pred_fallthru
          _
        // Predicated region
        $region17: #{data_embedding.1} parent=11 // pred_check
          %p165 = pneg %p113
        $region18: #{data_embedding.1} parent=11 // pred_check_branch
          %167 = sbr.rel (%p165) target = $region20
        $region19: #{data_embedding.1} parent=11 // pred_region
          %s168 = smul.u32 2, %s22
          %p169 = scmp.lt.s32.totalorder %s168, 1
          %s170 = scalar_select %p169, %s168, 1
          %p171 = scmp.lt.s32.totalorder %s23, 0
          %s172 = scalar_select %p171, %s23, 0
          %s173 = sadd.s32 %s172, %s170
          %s174 = smul.addr %s173, 8
          %s175 = scalar_lea.vmem %s2, %s174
          %s176 = smul.u32 2, %s22
        $region20: #{data_embedding.1} parent=11 // pred_fallthru
          _
      $region12: #{data_embedding.1} parent=5 // pred_fallthru
        _
      %p177 = scmp.lt.s32.totalorder %s12, 2
      // Predicated region
      $region21: #{data_embedding.1} parent=5 // pred_check
        %p178 = pneg %p177
      $region22: #{data_embedding.1} parent=5 // pred_check_branch
        %180 = sbr.rel (%p178) target = $region24
      $region23: #{data_embedding.1} parent=5 // pred_region
        // Predicated region
        $region25: #{data_embedding.1} parent=23 // pred_check
          %p181 = pneg %p53
        $region26: #{data_embedding.1} parent=23 // pred_check_branch
          %183 = sbr.rel (%p181) target = $region28
        $region27: #{data_embedding.1} parent=23 // pred_region
          %s184 = smul.u32 2, %s19
          %p185 = scmp.lt.s32.totalorder %s21, 1
          %s186 = scalar_select %p185, %s21, 1
          %p187 = scmp.lt.s32.totalorder %s184, 1
          %s188 = scalar_select %p187, %s184, 1
          %s189 = smul.addr %s186, 2
          %s190 = sadd.s32 %s188, %s189
          %s191 = smul.addr %s190, 8
          %s192 = scalar_lea.vmem %s0, %s191
          %s193 = smul.u32 2, %s19
        $region28: #{data_embedding.1} parent=23 // pred_fallthru
          _
      $region24: #{data_embedding.1} parent=5 // pred_fallthru
        _
      %p194 = scmp.le.s32.totalorder 1, %s12
      %p195 = scmp.lt.s32.totalorder %s12, 3
      %p196 = pnand %p194, %p195
      %p197 = pneg %p196
      // Predicated region
      $region29: #{data_embedding.1} parent=5 // pred_check
        _
      $region30: #{data_embedding.1} parent=5 // pred_check_branch
        %199 = sbr.rel (%p196) target = $region32
      $region31: #{data_embedding.1} parent=5 // pred_region
        %s200 = ssub.s32 %s12, 1
        %s201 = smul.u32 2, %s22
        %p202 = scmp.lt.s32.totalorder %s24, 1
        %s203 = scalar_select %p202, %s24, 1
        %p204 = scmp.lt.s32.totalorder %s201, 1
        %s205 = scalar_select %p204, %s201, 1
        %s206 = smul.addr %s203, 2
        %s207 = sadd.s32 %s205, %s206
        %s208 = smul.addr %s207, 8
        %s209 = scalar_lea.vmem %s0, %s208
        %p210 = pneg %p59
        %p211 = pneg %p56
        %p212 = scmp.lt.s32.totalorder %s23, 0
        %s213 = scalar_select %p212, %s23, 0
        %s214 = smul.addr %s213, 8
        %s215 = scalar_lea.vmem %s1, %s214
        %p216 = pneg %p85
        %p217 = pneg %p82
        %s218 = smul.u32 2, %s22
        %p219 = scmp.lt.s32.totalorder %s218, 1
        %s220 = scalar_select %p219, %s218, 1
        %p221 = scmp.lt.s32.totalorder %s23, 0
        %s222 = scalar_select %p221, %s23, 0
        %s223 = sadd.s32 %s222, %s220
        %s224 = smul.addr %s223, 8
        %s225 = scalar_lea.vmem %s2, %s224
        %p226 = pneg %p113
        %p227 = pneg %p110
        %p228 = pneg %p143
        %p229 = pneg %p140
        %s230 = sand.u32 %s130, 1
        %s231 = scalar_lea.sflag [#allocation3], %s230
        %s232 = sand.u32 %s130, 1
        %s233 = smul.addr %s232, 16
        %s234 = scalar_lea.vmem [#allocation2], %s233
        %s235 = smul.u32 2, %s22
        %p236 = scmp.lt.s32.totalorder %s24, 1
        %s237 = scalar_select %p236, %s24, 1
        %p238 = scmp.lt.s32.totalorder %s235, 1
        %s239 = scalar_select %p238, %s235, 1
        %s240 = smul.addr %s237, 2
        %s241 = sadd.s32 %s239, %s240
        %s242 = smul.addr %s241, 8
        %s243 = scalar_lea.vmem %s0, %s242
        %s244 = smul.u32 2, %s22
        %p245 = scmp.lt.s32.totalorder %s23, 0
        %s246 = scalar_select %p245, %s23, 0
        %s247 = smul.addr %s246, 8
        %s248 = scalar_lea.vmem %s1, %s247
        %s249 = smul.u32 2, %s22
        %p250 = scmp.lt.s32.totalorder %s249, 1
        %s251 = scalar_select %p250, %s249, 1
        %p252 = scmp.lt.s32.totalorder %s23, 0
        %s253 = scalar_select %p252, %s23, 0
        %s254 = sadd.s32 %s253, %s251
        %s255 = smul.addr %s254, 8
        %s256 = scalar_lea.vmem %s2, %s255
        %s257 = smul.u32 2, %s22
        %s258 = smul.u32 2, %s22
        %v259 = vld [vmem:[%s243] sm:$0xff]
        %v260 = vld [vmem:[%s243 + $0x8] sm:$0xff]
        %v261 = vld [vmem:[%s248] sm:$0xff]
        %v262 = vld [vmem:[%s248 + $0x8] sm:$0xff]
        %v263 = vld [vmem:[%s248 + $0x10] sm:$0xff]
        %v264 = vld [vmem:[%s256] sm:$0xff]
        %v265 = vld [vmem:[%s256 + $0x8] sm:$0xff]
        %vm266 = vcmask 195584
        %v268 = vsel %vm266, %v259, 0
        %v271 = vsel %vm266, %v260, 0
        %273 = vmatprep.subr.mxu0 0.0
        %274 = vmatpush1.msra.mxu0 0.0
        %275 = vmatprep.subr.mxu0 0.0
        %276 = vmatpush1.msra.mxu0 0.0
        %277 = vmatprep.subr.mxu0 0.0
        %278 = vmatpush1.msra.mxu0 0.0
        %279 = vmatprep.subr.mxu0 0.0
        %280 = vmatpush1.msra.mxu0 0.0
        %281 = vmatprep.subr.mxu0 0.0
        %282 = vmatpush1.msra.mxu0 0.0
        %283 = vmatprep.subr.mxu0 0.0
        %284 = vmatpush1.msra.mxu0 0.0
        %285 = vmatprep.subr.mxu0 0.0
        %286 = vmatpush1.msra.mxu0 0.0
        %287 = vmatprep.subr.mxu0 0.0
        %288 = vmatpush1.msra.mxu0 0.0
        %289 = vmatprep.subr.mxu0 0.0
        %290 = vmatpush1.msra.mxu0 0.0
        %291 = vmatprep.subr.mxu0 0.0
        %292 = vmatpush1.msra.mxu0 0.0
        %293 = vmatprep.subr.mxu0 0.0
        %294 = vmatpush1.msra.mxu0 0.0
        %295 = vmatprep.subr.mxu0 0.0
        %296 = vmatpush1.msra.mxu0 0.0
        %297 = vmatprep.subr.mxu0 0.0
        %298 = vmatpush1.msra.mxu0 0.0
        %299 = vmatprep.subr.mxu0 0.0
        %300 = vmatpush1.msra.mxu0 %v263
        %301 = vmatprep.subr.mxu0 0.0
        %302 = vmatpush1.msra.mxu0 %v262
        %303 = vmatprep.subr.mxu0 0.0
        %304 = vmatpush1.msra.mxu0 %v261
        %305 = vmatprep.subr.mxu0 0.0
        %306 = vmatpush2.msra.mxu0 0.0
        %307 = vmatprep.subr.mxu0 0.0
        %308 = vmatpush2.msra.mxu0 0.0
        %309 = vmatprep.subr.mxu0 0.0
        %310 = vmatpush2.msra.mxu0 0.0
        %311 = vmatprep.subr.mxu0 0.0
        %312 = vmatpush2.msra.mxu0 0.0
        %313 = vmatprep.subr.mxu0 0.0
        %314 = vmatpush2.msra.mxu0 0.0
        %315 = vmatprep.subr.mxu0 0.0
        %316 = vmatpush2.msra.mxu0 0.0
        %317 = vmatprep.subr.mxu0 0.0
        %318 = vmatpush2.msra.mxu0 0.0
        %319 = vmatprep.subr.mxu0 0.0
        %320 = vmatpush2.msra.mxu0 0.0
        %321 = vmatprep.subr.mxu0 0.0
        %322 = vmatpush2.msra.mxu0 0.0
        %323 = vmatprep.subr.mxu0 0.0
        %324 = vmatpush2.msra.mxu0 0.0
        %325 = vmatprep.subr.mxu0 0.0
        %326 = vmatpush2.msra.mxu0 0.0
        %327 = vmatprep.subr.mxu0 0.0
        %328 = vmatpush2.msra.mxu0 0.0
        %329 = vmatprep.subr.mxu0 0.0
        %330 = vmatpush2.msra.mxu0 0.0
        %331 = vmatprep.subr.mxu0 0.0
        %332 = vmatpush2.msra.mxu0 0.0
        %333 = vmatprep.subr.mxu0 0.0
        %334 = vmatpush2.msra.mxu0 0.0
        %335 = vmatprep.subr.mxu0 0.0
        %336 = vmatpush2.msra.mxu0 0.0
        %337 = vmatprep.mubr.f32.mxu0 0.0
        %338 = vmatmul.mubr.f32.gmra.mxu0 %v268
        %v339 = vpop.f32.mrf.mxu0
        %v340 = vadd.f32 %v264, %v339
        %v341 = vpop.f32.mrf.mxu0
        %342 = vmatprep.mubr.f32.mxu0 0.0
        %343 = vmatmul.mubr.f32.gmra.mxu0 %v271
        %v344 = vpop.f32.mrf.mxu0
        %v345 = vadd.f32 %v265, %v344
        %v346 = vpop.f32.mrf.mxu0
        %347 = vdwg.mxu0
        %348 = vst [vmem:[%s234] sm:$0xff] %v340
        %349 = vst [vmem:[%s234 + $0x8] sm:$0xff] %v345
        %s350 = sand.u32 %s130, 1
        %s351 = scalar_lea.sflag [#allocation3], %s350
        %s352 = sand.u32 %s130, 1
        %s353 = smul.addr %s352, 16
        %s354 = scalar_lea.vmem [#allocation2], %s353
        // Predicated region
        $region33: #{data_embedding.1} parent=31 // pred_check
          %p355 = pneg %p140
        $region34: #{data_embedding.1} parent=31 // pred_check_branch
          %357 = sbr.rel (%p355) target = $region36
        $region35: #{data_embedding.1} parent=31 // pred_region
          %s358 = smul.u32 2, %s22
          %s360 = ssub.s32 256, 256
          %361 = vsyncadd %s351, %s360
          %s362 = sadd.s32 %s23, %s358
          %s363 = smul.addr %s24, 2
          %s364 = sadd.s32 %s362, %s363
          %s365 = smul.addr %s364, 128
          %s366 = scalar_lea.hbm %s3, %s365
          %s367 = sshll.u32 %s354, 4
          %s368 = int_to_ptr.vmem [resolvable:$true] %s367
          %373 = dma.vmem_to_hbm [thread:$0]  %s368, 256, %s366, %s351, 128, 128, 8
        $region36: #{data_embedding.1} parent=31 // pred_fallthru
          _
      $region32: #{data_embedding.1} parent=5 // pred_fallthru
        _
      %p374 = scmp.le.s32.totalorder 2, %s12
      // Predicated region
      $region37: #{data_embedding.1} parent=5 // pred_check
        %p375 = pneg %p374
      $region38: #{data_embedding.1} parent=5 // pred_check_branch
        %377 = sbr.rel (%p375) target = $region40
      $region39: #{data_embedding.1} parent=5 // pred_region
        %s378 = ssub.s32 %s12, 2
        // Predicated region
        $region41: #{data_embedding.1} parent=39 // pred_check
          %p379 = pneg %p146
        $region42: #{data_embedding.1} parent=39 // pred_check_branch
          %381 = sbr.rel (%p379) target = $region44
        $region43: #{data_embedding.1} parent=39 // pred_region
          %s382 = sand.u32 %s131, 1
          %s383 = scalar_lea.sflag [#allocation3], %s382
          %s384 = sand.u32 %s131, 1
          %s385 = smul.addr %s384, 16
          %s386 = scalar_lea.vmem [#allocation2], %s385
          %387 = dma.done %s383, 256
        $region44: #{data_embedding.1} parent=39 // pred_fallthru
          _
      $region40: #{data_embedding.1} parent=5 // pred_fallthru
        _
    $region6: #{data_embedding.1} parent=1 // loop_footer
      %s16 = sadd.s32 1, %s12
    $region7: #{data_embedding.1} parent=1 // loop_footer_branch
      %11 = sbr.rel target = $region3
    $region8: #{data_embedding.1} parent=1 // loop_exit
      _
    %388 = vsyncpa [#allocation3], 1
    %s389 = scalar_lea.sflag [#allocation3], 1
    %390 = vsyncpa %s389, 1

</llo_original>
